<compile_context>
chip_gen: v5e
topology: v5e:2x2
jax: 0.10.0
libtpu: 0.0.40
codegen_flags: <defaults>
</compile_context>

<pallas_src>
import jax
import jax.numpy as jnp
from jax.experimental import pallas as pl
from jax.experimental.pallas import tpu as pltpu

_EPS = 1e-5  # nn.InstanceNorm1d default eps


def _conv_block_kernel(x_ref, apool_ref, app_ref,
                       w1s_ref, w1n_ref, b1_ref,
                       w2s_ref, w2n_ref, b2_ref,
                       w3s_ref, w3n_ref, b3_ref,
                       w4s_ref, w4n_ref, b4_ref,
                       out_ref):
    a_pool = apool_ref[...]                      # (N_out, N_in)  bf16
    a_pp = app_ref[...]                          # (N_out, N_out) bf16
    x = x_ref[...].astype(jnp.bfloat16)          # (N_in, B*C_in) cast in-kernel (free VPU)

    # ---- CustomPoolingAdd: weighted scatter-add fine -> coarse (dense matmul form) ----
    h = jnp.dot(a_pool, x, preferred_element_type=jnp.float32)   # (N_out, B*C_in) f32

    def graph_conv(h, ws_ref, wn_ref, b_ref):
        # h @ Ws_blk + (A_pp @ h) @ Wn_blk + b, then ReLU.
        # Ws_blk/Wn_blk are block-diagonal kron(I_B, W) so the folded-batch layout is
        # handled by plain 2-D matmuls (K = B*C).
        h16 = h.astype(jnp.bfloat16)
        agg = jnp.dot(a_pp, h16,
                      preferred_element_type=jnp.float32).astype(jnp.bfloat16)
        out = (jnp.dot(h16, ws_ref[...], preferred_element_type=jnp.float32)
               + jnp.dot(agg, wn_ref[...], preferred_element_type=jnp.float32)
               + b_ref[...])
        # TODO(synk): activation inside CustomGraphConvPointPoint assumed to be ReLU.
        return jnp.maximum(out, 0.0)

    def instance_norm(h):
        # InstanceNorm1d (affine=False): per-(batch,channel) normalization over nodes.
        # Folded layout => per-column normalization over axis 0, all in f32.
        mu = jnp.mean(h, axis=0, keepdims=True)
        diff = h - mu
        var = jnp.mean(diff * diff, axis=0, keepdims=True)
        return diff * jax.lax.rsqrt(var + _EPS)

    h = graph_conv(h, w1s_ref, w1n_ref, b1_ref)   # layer1
    h = graph_conv(h, w2s_ref, w2n_ref, b2_ref)   # layer2
    h = instance_norm(h)                          # in4
    h = graph_conv(h, w3s_ref, w3n_ref, b3_ref)   # layer3
    h = graph_conv(h, w4s_ref, w4n_ref, b4_ref)   # layer4
    h = instance_norm(h)                          # in42

    out_ref[...] = h.astype(out_ref.dtype)        # lane-dense (N_out, B*C_out) store


def _full(shape):
    return pl.BlockSpec(shape, lambda *_: (0,) * len(shape))


def conv_block4_forward(x, pool_edge_index, pool_edge_weight, n_pool_out,
                        pp_edge_index, pp_edge_weight, params):
    """Runs the _ConvBlock4LessLayers forward pass.

    x:                (B, N_in, C_in) node features
    pool_edge_index:  (2, E_pool) int32, [src (fine), dst (coarse)]
    pool_edge_weight: (E_pool,)   float32 edge_attr weights
    pp_edge_index:    (2, E_pp)   int32, point-point edges on the coarse graph
    pp_edge_weight:   (E_pp,)     float32 edge_attr weights
    params:           dict of w{1..4}{s,n} and b{1..4}
    """
    B, N_in, C_in = x.shape
    C_out = params["w1n"].shape[1]
    N_out = int(n_pool_out)

    # ---- glue: sparse edge lists -> dense weighted adjacency (plain JAX), bf16 feed ----
    a_pool = jnp.zeros((N_out, N_in), jnp.float32).at[
        pool_edge_index[1], pool_edge_index[0]].add(pool_edge_weight).astype(jnp.bfloat16)
    a_pp = jnp.zeros((N_out, N_out), jnp.float32).at[
        pp_edge_index[1], pp_edge_index[0]].add(pp_edge_weight).astype(jnp.bfloat16)

    # ---- fold batch into the lane axis: (B, N_in, C_in) -> (N_in, B*C_in) ----
    x_f = jnp.transpose(x, (1, 0, 2)).reshape(N_in, B * C_in)

    # ---- block-diagonal per-batch weights (kron(I_B, W)), bf16; biases tiled, f32 ----
    eye_b = jnp.eye(B, dtype=jnp.float32)
    weight_inputs = []
    weight_specs = []
    for i in (1, 2, 3, 4):
        ws = jnp.kron(eye_b, params[f"w{i}s"].astype(jnp.float32)).astype(jnp.bfloat16)
        wn = jnp.kron(eye_b, params[f"w{i}n"].astype(jnp.float32)).astype(jnp.bfloat16)
        bi = jnp.tile(params[f"b{i}"].astype(jnp.float32), (B,)).reshape(1, B * C_out)
        weight_inputs += [ws, wn, bi]
        weight_specs += [_full(ws.shape), _full(wn.shape), _full(bi.shape)]

    out_flat = pl.pallas_call(
        _conv_block_kernel,
        out_shape=jax.ShapeDtypeStruct((N_out, B * C_out), jnp.float32),
        grid=(1,),  # whole block fused in one step: adjacency/weights DMA'd exactly once
        in_specs=[_full(x_f.shape), _full(a_pool.shape), _full(a_pp.shape)]
                 + weight_specs,
        out_specs=_full((N_out, B * C_out)),
        compiler_params=pltpu.CompilerParams(
            dimension_semantics=("arbitrary",),
            vmem_limit_bytes=64 * 1024 * 1024),
    )(x_f, a_pool, a_pp, *weight_inputs)

    # Unfold back to (B, N_out, C_out).
    return out_flat.reshape(N_out, B, C_out).transpose(1, 0, 2)


def _init_params(key, c_in, c_out):
    ks = jax.random.split(key, 12)
    p = {}
    idx = 0
    for i, cin in zip((1, 2, 3, 4), (c_in, c_out, c_out, c_out)):
        p[f"w{i}s"] = 0.1 * jax.random.normal(ks[idx], (cin, c_out), jnp.float32); idx += 1
        p[f"w{i}n"] = 0.1 * jax.random.normal(ks[idx], (cin, c_out), jnp.float32); idx += 1
        p[f"b{i}"] = 0.01 * jax.random.normal(ks[idx], (c_out,), jnp.float32); idx += 1
    return p


if __name__ == "__main__":
    key = jax.random.PRNGKey(0)
    k_x, k_pw, k_ew, k_p = jax.random.split(key, 4)

    B, N_in, C_in = 4, 32, 4       # batch, fine nodes, in_channels
    N_out, C_out = 16, 32          # coarse nodes (poolDataForward), out_channels
                                   # B*C_out = 128 -> lane-dense output store

    x = jax.random.normal(k_x, (B, N_in, C_in), jnp.float32)

    # Pooling graph: each fine node i contributes to coarse node i // 2.
    pool_src = jnp.arange(N_in, dtype=jnp.int32)
    pool_dst = pool_src // 2
    pool_edge_index = jnp.stack([pool_src, pool_dst])
    pool_edge_weight = jax.random.uniform(k_pw, (N_in,), jnp.float32, 0.5, 1.5)

    # Point-point graph on the coarse nodes: bidirectional ring.
    ring = jnp.arange(N_out, dtype=jnp.int32)
    pp_src = jnp.concatenate([ring, (ring + 1) % N_out])
    pp_dst = jnp.concatenate([(ring + 1) % N_out, ring])
    pp_edge_index = jnp.stack([pp_src, pp_dst])
    pp_edge_weight = jax.random.uniform(k_ew, (2 * N_out,), jnp.float32, 0.5, 1.5)

    params = _init_params(k_p, C_in, C_out)

    out = conv_block4_forward(x, pool_edge_index, pool_edge_weight, N_out,
                              pp_edge_index, pp_edge_weight, params)
    jax.block_until_ready(out)
    assert out.shape == (B, N_out, C_out)
    print("KERNEL_OK")
</pallas_src>

<mosaic_0001>
module attributes {stable_mosaic.version = 11 : i64} {
  func.func @_conv_block_kernel(%arg0: i32, %arg1: memref<32x16xf32, #tpu.memory_space<vmem>>, %arg2: memref<16x32xbf16, #tpu.memory_space<vmem>>, %arg3: memref<16x16xbf16, #tpu.memory_space<vmem>>, %arg4: memref<16x128xbf16, #tpu.memory_space<vmem>>, %arg5: memref<16x128xbf16, #tpu.memory_space<vmem>>, %arg6: memref<1x128xf32, #tpu.memory_space<vmem>>, %arg7: memref<128x128xbf16, #tpu.memory_space<vmem>>, %arg8: memref<128x128xbf16, #tpu.memory_space<vmem>>, %arg9: memref<1x128xf32, #tpu.memory_space<vmem>>, %arg10: memref<128x128xbf16, #tpu.memory_space<vmem>>, %arg11: memref<128x128xbf16, #tpu.memory_space<vmem>>, %arg12: memref<1x128xf32, #tpu.memory_space<vmem>>, %arg13: memref<128x128xbf16, #tpu.memory_space<vmem>>, %arg14: memref<128x128xbf16, #tpu.memory_space<vmem>>, %arg15: memref<1x128xf32, #tpu.memory_space<vmem>>, %arg16: memref<16x128xf32, #tpu.memory_space<vmem>>) attributes {dimension_semantics = [#tpu.dimension_semantics<arbitrary>], iteration_bounds = array<i64: 1>, scalar_prefetch = 0 : i64, scratch_operands = 0 : i64, tpu.core_type = #tpu.core_type<tc>, window_params = [{pipeline_mode = #tpu.pipeline_mode<synchronous>, transform_indices = @transform_0, window_bounds = array<i64: 32, 16>}, {pipeline_mode = #tpu.pipeline_mode<synchronous>, transform_indices = @transform_1, window_bounds = array<i64: 16, 32>}, {pipeline_mode = #tpu.pipeline_mode<synchronous>, transform_indices = @transform_2, window_bounds = array<i64: 16, 16>}, {pipeline_mode = #tpu.pipeline_mode<synchronous>, transform_indices = @transform_3, window_bounds = array<i64: 16, 128>}, {pipeline_mode = #tpu.pipeline_mode<synchronous>, transform_indices = @transform_4, window_bounds = array<i64: 16, 128>}, {pipeline_mode = #tpu.pipeline_mode<synchronous>, transform_indices = @transform_5, window_bounds = array<i64: 1, 128>}, {pipeline_mode = #tpu.pipeline_mode<synchronous>, transform_indices = @transform_6, window_bounds = array<i64: 128, 128>}, {pipeline_mode = #tpu.pipeline_mode<synchronous>, transform_indices = @transform_7, window_bounds = array<i64: 128, 128>}, {pipeline_mode = #tpu.pipeline_mode<synchronous>, transform_indices = @transform_8, window_bounds = array<i64: 1, 128>}, {pipeline_mode = #tpu.pipeline_mode<synchronous>, transform_indices = @transform_9, window_bounds = array<i64: 128, 128>}, {pipeline_mode = #tpu.pipeline_mode<synchronous>, transform_indices = @transform_10, window_bounds = array<i64: 128, 128>}, {pipeline_mode = #tpu.pipeline_mode<synchronous>, transform_indices = @transform_11, window_bounds = array<i64: 1, 128>}, {pipeline_mode = #tpu.pipeline_mode<synchronous>, transform_indices = @transform_12, window_bounds = array<i64: 128, 128>}, {pipeline_mode = #tpu.pipeline_mode<synchronous>, transform_indices = @transform_13, window_bounds = array<i64: 128, 128>}, {pipeline_mode = #tpu.pipeline_mode<synchronous>, transform_indices = @transform_14, window_bounds = array<i64: 1, 128>}, {pipeline_mode = #tpu.pipeline_mode<synchronous>, transform_indices = @transform_15, window_bounds = array<i64: 16, 128>}]} {
    %c0 = arith.constant 0 : index
    %c0_0 = arith.constant 0 : index
    %0 = vector.load %arg2[%c0, %c0_0] : memref<16x32xbf16, #tpu.memory_space<vmem>>, vector<16x32xbf16>
    %c0_1 = arith.constant 0 : index
    %c0_2 = arith.constant 0 : index
    %1 = vector.load %arg3[%c0_1, %c0_2] : memref<16x16xbf16, #tpu.memory_space<vmem>>, vector<16x16xbf16>
    %c0_3 = arith.constant 0 : index
    %c0_4 = arith.constant 0 : index
    %2 = vector.load %arg1[%c0_3, %c0_4] : memref<32x16xf32, #tpu.memory_space<vmem>>, vector<32x16xf32>
    %3 = arith.truncf %2 : vector<32x16xf32> to vector<32x16xbf16>
    %cst = arith.constant dense<0.000000e+00> : vector<16x16xf32>
    %4 = tpu.matmul %0, %3, %cst {dimension_numbers = #tpu.dot_dimension_numbers<[1], [0], [0], [1], [0, 0, 1, 1], [], []>} : vector<16x32xbf16>, vector<32x16xbf16>, vector<16x16xf32> -> vector<16x16xf32>
    %5 = arith.truncf %4 : vector<16x16xf32> to vector<16x16xbf16>
    %cst_5 = arith.constant dense<0.000000e+00> : vector<16x16xf32>
    %6 = tpu.matmul %1, %5, %cst_5 {dimension_numbers = #tpu.dot_dimension_numbers<[1], [0], [0], [1], [0, 0, 1, 1], [], []>} : vector<16x16xbf16>, vector<16x16xbf16>, vector<16x16xf32> -> vector<16x16xf32>
    %7 = arith.truncf %6 : vector<16x16xf32> to vector<16x16xbf16>
    %c0_6 = arith.constant 0 : index
    %c0_7 = arith.constant 0 : index
    %8 = vector.load %arg4[%c0_6, %c0_7] : memref<16x128xbf16, #tpu.memory_space<vmem>>, vector<16x128xbf16>
    %cst_8 = arith.constant dense<0.000000e+00> : vector<16x128xf32>
    %9 = tpu.matmul %5, %8, %cst_8 {dimension_numbers = #tpu.dot_dimension_numbers<[1], [0], [0], [1], [0, 0, 1, 1], [], []>} : vector<16x16xbf16>, vector<16x128xbf16>, vector<16x128xf32> -> vector<16x128xf32>
    %c0_9 = arith.constant 0 : index
    %c0_10 = arith.constant 0 : index
    %10 = vector.load %arg5[%c0_9, %c0_10] : memref<16x128xbf16, #tpu.memory_space<vmem>>, vector<16x128xbf16>
    %cst_11 = arith.constant dense<0.000000e+00> : vector<16x128xf32>
    %11 = tpu.matmul %7, %10, %cst_11 {dimension_numbers = #tpu.dot_dimension_numbers<[1], [0], [0], [1], [0, 0, 1, 1], [], []>} : vector<16x16xbf16>, vector<16x128xbf16>, vector<16x128xf32> -> vector<16x128xf32>
    %12 = arith.addf %9, %11 : vector<16x128xf32>
    %c0_12 = arith.constant 0 : index
    %c0_13 = arith.constant 0 : index
    %13 = vector.load %arg6[%c0_12, %c0_13] : memref<1x128xf32, #tpu.memory_space<vmem>>, vector<1x128xf32>
    %14 = vector.broadcast %13 : vector<1x128xf32> to vector<16x128xf32>
    %15 = arith.addf %12, %14 : vector<16x128xf32>
    %cst_14 = arith.constant 0.000000e+00 : f32
    %16 = vector.broadcast %cst_14 : f32 to vector<16x128xf32>
    %17 = arith.maximumf %15, %16 : vector<16x128xf32>
    %18 = arith.truncf %17 : vector<16x128xf32> to vector<16x128xbf16>
    %cst_15 = arith.constant dense<0.000000e+00> : vector<16x128xf32>
    %19 = tpu.matmul %1, %18, %cst_15 {dimension_numbers = #tpu.dot_dimension_numbers<[1], [0], [0], [1], [0, 0, 1, 1], [], []>} : vector<16x16xbf16>, vector<16x128xbf16>, vector<16x128xf32> -> vector<16x128xf32>
    %20 = arith.truncf %19 : vector<16x128xf32> to vector<16x128xbf16>
    %c0_16 = arith.constant 0 : index
    %c0_17 = arith.constant 0 : index
    %21 = vector.load %arg7[%c0_16, %c0_17] : memref<128x128xbf16, #tpu.memory_space<vmem>>, vector<128x128xbf16>
    %cst_18 = arith.constant dense<0.000000e+00> : vector<16x128xf32>
    %22 = tpu.matmul %18, %21, %cst_18 {dimension_numbers = #tpu.dot_dimension_numbers<[1], [0], [0], [1], [0, 0, 1, 1], [], []>} : vector<16x128xbf16>, vector<128x128xbf16>, vector<16x128xf32> -> vector<16x128xf32>
    %c0_19 = arith.constant 0 : index
    %c0_20 = arith.constant 0 : index
    %23 = vector.load %arg8[%c0_19, %c0_20] : memref<128x128xbf16, #tpu.memory_space<vmem>>, vector<128x128xbf16>
    %cst_21 = arith.constant dense<0.000000e+00> : vector<16x128xf32>
    %24 = tpu.matmul %20, %23, %cst_21 {dimension_numbers = #tpu.dot_dimension_numbers<[1], [0], [0], [1], [0, 0, 1, 1], [], []>} : vector<16x128xbf16>, vector<128x128xbf16>, vector<16x128xf32> -> vector<16x128xf32>
    %25 = arith.addf %22, %24 : vector<16x128xf32>
    %c0_22 = arith.constant 0 : index
    %c0_23 = arith.constant 0 : index
    %26 = vector.load %arg9[%c0_22, %c0_23] : memref<1x128xf32, #tpu.memory_space<vmem>>, vector<1x128xf32>
    %27 = vector.broadcast %26 : vector<1x128xf32> to vector<16x128xf32>
    %28 = arith.addf %25, %27 : vector<16x128xf32>
    %cst_24 = arith.constant 0.000000e+00 : f32
    %29 = vector.broadcast %cst_24 : f32 to vector<16x128xf32>
    %30 = arith.maximumf %28, %29 : vector<16x128xf32>
    %cst_25 = arith.constant dense<0.000000e+00> : vector<128xf32>
    %31 = vector.multi_reduction <add>, %30, %cst_25 [0] : vector<16x128xf32> to vector<128xf32>
    %32 = vector.shape_cast %31 : vector<128xf32> to vector<1x128xf32>
    %cst_26 = arith.constant 1.600000e+01 : f32
    %33 = vector.broadcast %cst_26 : f32 to vector<1x128xf32>
    %34 = arith.divf %32, %33 : vector<1x128xf32>
    %35 = vector.broadcast %34 : vector<1x128xf32> to vector<16x128xf32>
    %36 = arith.subf %30, %35 : vector<16x128xf32>
    %37 = arith.mulf %36, %36 : vector<16x128xf32>
    %cst_27 = arith.constant dense<0.000000e+00> : vector<128xf32>
    %38 = vector.multi_reduction <add>, %37, %cst_27 [0] : vector<16x128xf32> to vector<128xf32>
    %39 = vector.shape_cast %38 : vector<128xf32> to vector<1x128xf32>
    %cst_28 = arith.constant 1.600000e+01 : f32
    %40 = vector.broadcast %cst_28 : f32 to vector<1x128xf32>
    %41 = arith.divf %39, %40 : vector<1x128xf32>
    %cst_29 = arith.constant 9.99999974E-6 : f32
    %42 = vector.broadcast %cst_29 : f32 to vector<1x128xf32>
    %43 = arith.addf %41, %42 : vector<1x128xf32>
    %44 = math.rsqrt %43 : vector<1x128xf32>
    %45 = vector.broadcast %44 : vector<1x128xf32> to vector<16x128xf32>
    %46 = arith.mulf %36, %45 : vector<16x128xf32>
    %47 = arith.truncf %46 : vector<16x128xf32> to vector<16x128xbf16>
    %cst_30 = arith.constant dense<0.000000e+00> : vector<16x128xf32>
    %48 = tpu.matmul %1, %47, %cst_30 {dimension_numbers = #tpu.dot_dimension_numbers<[1], [0], [0], [1], [0, 0, 1, 1], [], []>} : vector<16x16xbf16>, vector<16x128xbf16>, vector<16x128xf32> -> vector<16x128xf32>
    %49 = arith.truncf %48 : vector<16x128xf32> to vector<16x128xbf16>
    %c0_31 = arith.constant 0 : index
    %c0_32 = arith.constant 0 : index
    %50 = vector.load %arg10[%c0_31, %c0_32] : memref<128x128xbf16, #tpu.memory_space<vmem>>, vector<128x128xbf16>
    %cst_33 = arith.constant dense<0.000000e+00> : vector<16x128xf32>
    %51 = tpu.matmul %47, %50, %cst_33 {dimension_numbers = #tpu.dot_dimension_numbers<[1], [0], [0], [1], [0, 0, 1, 1], [], []>} : vector<16x128xbf16>, vector<128x128xbf16>, vector<16x128xf32> -> vector<16x128xf32>
    %c0_34 = arith.constant 0 : index
    %c0_35 = arith.constant 0 : index
    %52 = vector.load %arg11[%c0_34, %c0_35] : memref<128x128xbf16, #tpu.memory_space<vmem>>, vector<128x128xbf16>
    %cst_36 = arith.constant dense<0.000000e+00> : vector<16x128xf32>
    %53 = tpu.matmul %49, %52, %cst_36 {dimension_numbers = #tpu.dot_dimension_numbers<[1], [0], [0], [1], [0, 0, 1, 1], [], []>} : vector<16x128xbf16>, vector<128x128xbf16>, vector<16x128xf32> -> vector<16x128xf32>
    %54 = arith.addf %51, %53 : vector<16x128xf32>
    %c0_37 = arith.constant 0 : index
    %c0_38 = arith.constant 0 : index
    %55 = vector.load %arg12[%c0_37, %c0_38] : memref<1x128xf32, #tpu.memory_space<vmem>>, vector<1x128xf32>
    %56 = vector.broadcast %55 : vector<1x128xf32> to vector<16x128xf32>
    %57 = arith.addf %54, %56 : vector<16x128xf32>
    %cst_39 = arith.constant 0.000000e+00 : f32
    %58 = vector.broadcast %cst_39 : f32 to vector<16x128xf32>
    %59 = arith.maximumf %57, %58 : vector<16x128xf32>
    %60 = arith.truncf %59 : vector<16x128xf32> to vector<16x128xbf16>
    %cst_40 = arith.constant dense<0.000000e+00> : vector<16x128xf32>
    %61 = tpu.matmul %1, %60, %cst_40 {dimension_numbers = #tpu.dot_dimension_numbers<[1], [0], [0], [1], [0, 0, 1, 1], [], []>} : vector<16x16xbf16>, vector<16x128xbf16>, vector<16x128xf32> -> vector<16x128xf32>
    %62 = arith.truncf %61 : vector<16x128xf32> to vector<16x128xbf16>
    %c0_41 = arith.constant 0 : index
    %c0_42 = arith.constant 0 : index
    %63 = vector.load %arg13[%c0_41, %c0_42] : memref<128x128xbf16, #tpu.memory_space<vmem>>, vector<128x128xbf16>
    %cst_43 = arith.constant dense<0.000000e+00> : vector<16x128xf32>
    %64 = tpu.matmul %60, %63, %cst_43 {dimension_numbers = #tpu.dot_dimension_numbers<[1], [0], [0], [1], [0, 0, 1, 1], [], []>} : vector<16x128xbf16>, vector<128x128xbf16>, vector<16x128xf32> -> vector<16x128xf32>
    %c0_44 = arith.constant 0 : index
    %c0_45 = arith.constant 0 : index
    %65 = vector.load %arg14[%c0_44, %c0_45] : memref<128x128xbf16, #tpu.memory_space<vmem>>, vector<128x128xbf16>
    %cst_46 = arith.constant dense<0.000000e+00> : vector<16x128xf32>
    %66 = tpu.matmul %62, %65, %cst_46 {dimension_numbers = #tpu.dot_dimension_numbers<[1], [0], [0], [1], [0, 0, 1, 1], [], []>} : vector<16x128xbf16>, vector<128x128xbf16>, vector<16x128xf32> -> vector<16x128xf32>
    %67 = arith.addf %64, %66 : vector<16x128xf32>
    %c0_47 = arith.constant 0 : index
    %c0_48 = arith.constant 0 : index
    %68 = vector.load %arg15[%c0_47, %c0_48] : memref<1x128xf32, #tpu.memory_space<vmem>>, vector<1x128xf32>
    %69 = vector.broadcast %68 : vector<1x128xf32> to vector<16x128xf32>
    %70 = arith.addf %67, %69 : vector<16x128xf32>
    %cst_49 = arith.constant 0.000000e+00 : f32
    %71 = vector.broadcast %cst_49 : f32 to vector<16x128xf32>
    %72 = arith.maximumf %70, %71 : vector<16x128xf32>
    %cst_50 = arith.constant dense<0.000000e+00> : vector<128xf32>
    %73 = vector.multi_reduction <add>, %72, %cst_50 [0] : vector<16x128xf32> to vector<128xf32>
    %74 = vector.shape_cast %73 : vector<128xf32> to vector<1x128xf32>
    %cst_51 = arith.constant 1.600000e+01 : f32
    %75 = vector.broadcast %cst_51 : f32 to vector<1x128xf32>
    %76 = arith.divf %74, %75 : vector<1x128xf32>
    %77 = vector.broadcast %76 : vector<1x128xf32> to vector<16x128xf32>
    %78 = arith.subf %72, %77 : vector<16x128xf32>
    %79 = arith.mulf %78, %78 : vector<16x128xf32>
    %cst_52 = arith.constant dense<0.000000e+00> : vector<128xf32>
    %80 = vector.multi_reduction <add>, %79, %cst_52 [0] : vector<16x128xf32> to vector<128xf32>
    %81 = vector.shape_cast %80 : vector<128xf32> to vector<1x128xf32>
    %cst_53 = arith.constant 1.600000e+01 : f32
    %82 = vector.broadcast %cst_53 : f32 to vector<1x128xf32>
    %83 = arith.divf %81, %82 : vector<1x128xf32>
    %cst_54 = arith.constant 9.99999974E-6 : f32
    %84 = vector.broadcast %cst_54 : f32 to vector<1x128xf32>
    %85 = arith.addf %83, %84 : vector<1x128xf32>
    %86 = math.rsqrt %85 : vector<1x128xf32>
    %87 = vector.broadcast %86 : vector<1x128xf32> to vector<16x128xf32>
    %88 = arith.mulf %78, %87 : vector<16x128xf32>
    %c0_55 = arith.constant 0 : index
    %c0_56 = arith.constant 0 : index
    %89 = vector.load %arg16[%c0_55, %c0_56] : memref<16x128xf32, #tpu.memory_space<vmem>>, vector<16x128xf32>
    tpu.vector_store %arg16[%c0_55, %c0_56], %88 {strides = array<i32>} : memref<16x128xf32, #tpu.memory_space<vmem>>, vector<16x128xf32>,
    return
  }
  func.func @transform_0(%arg0: i32) -> (i32, i32) {
    %c0_i32 = arith.constant 0 : i32
    %c0_i32_0 = arith.constant 0 : i32
    %c0_i32_1 = arith.constant 0 : i32
    return %c0_i32, %c0_i32_0 : i32, i32
  }
  func.func @transform_1(%arg0: i32) -> (i32, i32) {
    %c0_i32 = arith.constant 0 : i32
    %c0_i32_0 = arith.constant 0 : i32
    %c0_i32_1 = arith.constant 0 : i32
    return %c0_i32, %c0_i32_0 : i32, i32
  }
  func.func @transform_2(%arg0: i32) -> (i32, i32) {
    %c0_i32 = arith.constant 0 : i32
    %c0_i32_0 = arith.constant 0 : i32
    %c0_i32_1 = arith.constant 0 : i32
    return %c0_i32, %c0_i32_0 : i32, i32
  }
  func.func @transform_3(%arg0: i32) -> (i32, i32) {
    %c0_i32 = arith.constant 0 : i32
    %c0_i32_0 = arith.constant 0 : i32
    %c0_i32_1 = arith.constant 0 : i32
    return %c0_i32, %c0_i32_0 : i32, i32
  }
  func.func @transform_4(%arg0: i32) -> (i32, i32) {
    %c0_i32 = arith.constant 0 : i32
    %c0_i32_0 = arith.constant 0 : i32
    %c0_i32_1 = arith.constant 0 : i32
    return %c0_i32, %c0_i32_0 : i32, i32
  }
  func.func @transform_5(%arg0: i32) -> (i32, i32) {
    %c0_i32 = arith.constant 0 : i32
    %c0_i32_0 = arith.constant 0 : i32
    %c0_i32_1 = arith.constant 0 : i32
    return %c0_i32, %c0_i32_0 : i32, i32
  }
  func.func @transform_6(%arg0: i32) -> (i32, i32) {
    %c0_i32 = arith.constant 0 : i32
    %c0_i32_0 = arith.constant 0 : i32
    %c0_i32_1 = arith.constant 0 : i32
    return %c0_i32, %c0_i32_0 : i32, i32
  }
  func.func @transform_7(%arg0: i32) -> (i32, i32) {
    %c0_i32 = arith.constant 0 : i32
    %c0_i32_0 = arith.constant 0 : i32
    %c0_i32_1 = arith.constant 0 : i32
    return %c0_i32, %c0_i32_0 : i32, i32
  }
  func.func @transform_8(%arg0: i32) -> (i32, i32) {
    %c0_i32 = arith.constant 0 : i32
    %c0_i32_0 = arith.constant 0 : i32
    %c0_i32_1 = arith.constant 0 : i32
    return %c0_i32, %c0_i32_0 : i32, i32
  }
  func.func @transform_9(%arg0: i32) -> (i32, i32) {
    %c0_i32 = arith.constant 0 : i32
    %c0_i32_0 = arith.constant 0 : i32
    %c0_i32_1 = arith.constant 0 : i32
    return %c0_i32, %c0_i32_0 : i32, i32
  }
  func.func @transform_10(%arg0: i32) -> (i32, i32) {
    %c0_i32 = arith.constant 0 : i32
    %c0_i32_0 = arith.constant 0 : i32
    %c0_i32_1 = arith.constant 0 : i32
    return %c0_i32, %c0_i32_0 : i32, i32
  }
  func.func @transform_11(%arg0: i32) -> (i32, i32) {
    %c0_i32 = arith.constant 0 : i32
    %c0_i32_0 = arith.constant 0 : i32
    %c0_i32_1 = arith.constant 0 : i32
    return %c0_i32, %c0_i32_0 : i32, i32
  }
  func.func @transform_12(%arg0: i32) -> (i32, i32) {
    %c0_i32 = arith.constant 0 : i32
    %c0_i32_0 = arith.constant 0 : i32
    %c0_i32_1 = arith.constant 0 : i32
    return %c0_i32, %c0_i32_0 : i32, i32
  }
  func.func @transform_13(%arg0: i32) -> (i32, i32) {
    %c0_i32 = arith.constant 0 : i32
    %c0_i32_0 = arith.constant 0 : i32
    %c0_i32_1 = arith.constant 0 : i32
    return %c0_i32, %c0_i32_0 : i32, i32
  }
  func.func @transform_14(%arg0: i32) -> (i32, i32) {
    %c0_i32 = arith.constant 0 : i32
    %c0_i32_0 = arith.constant 0 : i32
    %c0_i32_1 = arith.constant 0 : i32
    return %c0_i32, %c0_i32_0 : i32, i32
  }
  func.func @transform_15(%arg0: i32) -> (i32, i32) {
    %c0_i32 = arith.constant 0 : i32
    %c0_i32_0 = arith.constant 0 : i32
    %c0_i32_1 = arith.constant 0 : i32
    return %c0_i32, %c0_i32_0 : i32, i32
  }
}

</mosaic_0001>

<llo_original>
// kernel: tpu_custom_call.1
$region0: #{tpu_custom_call.1}
  #allocation0 [shape = 'u32[]', space=smem, size = 0x4, offset = 0x4, fixed_abs, tag = 'smem constant byte address 0x4 - core index']
  #allocation1 [shape = 'u32[72,128]{1,0:T(1,128)}', space=vmem, size = 0x9000, scoped, tag = 'internal scratch']
  %s0 = inlined_call_operand.vmem [shape: f32[32,16], index: 0, kind: input, shape index: {}]
  %s1 = inlined_call_operand.vmem [shape: bf16[16,32], index: 1, kind: input, shape index: {}]
  %s2 = inlined_call_operand.vmem [shape: bf16[16,16], index: 2, kind: input, shape index: {}]
  %s3 = inlined_call_operand.vmem [shape: bf16[16,128], index: 3, kind: input, shape index: {}]
  %s4 = inlined_call_operand.vmem [shape: bf16[16,128], index: 4, kind: input, shape index: {}]
  %s5 = inlined_call_operand.vmem [shape: f32[1,128], index: 5, kind: input, shape index: {}]
  %s6 = inlined_call_operand.hbm [shape: bf16[128,128], index: 6, kind: input, shape index: {}]
  %s7 = inlined_call_operand.hbm [shape: bf16[128,128], index: 7, kind: input, shape index: {}]
  %s8 = inlined_call_operand.vmem [shape: f32[1,128], index: 8, kind: input, shape index: {}]
  %s9 = inlined_call_operand.hbm [shape: bf16[128,128], index: 9, kind: input, shape index: {}]
  %s10 = inlined_call_operand.hbm [shape: bf16[128,128], index: 10, kind: input, shape index: {}]
  %s11 = inlined_call_operand.vmem [shape: f32[1,128], index: 11, kind: input, shape index: {}]
  %s12 = inlined_call_operand.hbm [shape: bf16[128,128], index: 12, kind: input, shape index: {}]
  %s13 = inlined_call_operand.hbm [shape: bf16[128,128], index: 13, kind: input, shape index: {}]
  %s14 = inlined_call_operand.vmem [shape: f32[1,128], index: 14, kind: input, shape index: {}]
  %s15 = inlined_call_operand.hbm [shape: f32[16,128], index: 15, kind: output, shape index: {}]
  %s16 = sld [smem:[#allocation0]]
  $region94: #{tpu_custom_call.1} parent=0
    _
  %s18 = ssub.s32 1, %s16
  %s19 = scalar_select 0, %s18, %s16
  $region1: #{tpu_custom_call.1} parent=0
    #allocation2 [shape = 'u8[32768]{0}', space=vmem, size = 0x8000, scoped, tag = 'input window, operand 6, single buffered']
    #allocation3 [shape = 's32[1]{0}', space=sflag, size = 0x4, scoped, tag = 'scoped memory for tpu_custom_call.1']
    #allocation4 [shape = 's32[1]{0}', space=sflag, size = 0x4, scoped, tag = 'scoped memory for tpu_custom_call.1']
    #allocation5 [shape = 'u8[32768]{0}', space=vmem, size = 0x8000, scoped, tag = 'input window, operand 7, single buffered']
    #allocation6 [shape = 's32[1]{0}', space=sflag, size = 0x4, scoped, tag = 'scoped memory for tpu_custom_call.1']
    #allocation7 [shape = 'u8[32768]{0}', space=vmem, size = 0x8000, scoped, tag = 'input window, operand 9, single buffered']
    #allocation8 [shape = 'u8[32768]{0}', space=vmem, size = 0x8000, scoped, tag = 'input window, operand 10, single buffered']
    #allocation9 [shape = 's32[1]{0}', space=sflag, size = 0x4, scoped, tag = 'scoped memory for tpu_custom_call.1']
    #allocation10 [shape = 'u8[32768]{0}', space=vmem, size = 0x8000, scoped, tag = 'input window, operand 12, single buffered']
    #allocation11 [shape = 'u8[32768]{0}', space=vmem, size = 0x8000, scoped, tag = 'input window, operand 13, single buffered']
    #allocation12 [shape = 's32[1]{0}', space=sflag, size = 0x4, scoped, tag = 'scoped memory for tpu_custom_call.1']
    #allocation13 [shape = 'u8[8192]{0}', space=vmem, size = 0x2000, scoped, tag = 'output window, operand 0, single buffered']
    %20 = vsyncpa [#allocation3], 0
    %21 = vsyncpa [#allocation6], 0
    %22 = vsyncpa [#allocation9], 0
    %23 = vsyncpa [#allocation12], 0
    %24 = vsyncpa [#allocation4], 0
    // Predicated region
    $region2: #{tpu_custom_call.1} parent=1 // pred_check
      _
    $region3: #{tpu_custom_call.1} parent=1 // pred_check_branch
      %26 = sbr.rel (0) target = $region5
    $region4: #{tpu_custom_call.1} parent=1 // pred_region
      _
    $region5: #{tpu_custom_call.1} parent=1 // pred_fallthru
      _
    // Predicated region
    $region6: #{tpu_custom_call.1} parent=1 // pred_check
      _
    $region7: #{tpu_custom_call.1} parent=1 // pred_check_branch
      %28 = sbr.rel (0) target = $region9
    $region8: #{tpu_custom_call.1} parent=1 // pred_region
      _
    $region9: #{tpu_custom_call.1} parent=1 // pred_fallthru
      _
    // Predicated region
    $region10: #{tpu_custom_call.1} parent=1 // pred_check
      _
    $region11: #{tpu_custom_call.1} parent=1 // pred_check_branch
      %30 = sbr.rel (0) target = $region13
    $region12: #{tpu_custom_call.1} parent=1 // pred_region
      _
    $region13: #{tpu_custom_call.1} parent=1 // pred_fallthru
      _
    // Predicated region
    $region14: #{tpu_custom_call.1} parent=1 // pred_check
      _
    $region15: #{tpu_custom_call.1} parent=1 // pred_check_branch
      %32 = sbr.rel (0) target = $region17
    $region16: #{tpu_custom_call.1} parent=1 // pred_region
      _
    $region17: #{tpu_custom_call.1} parent=1 // pred_fallthru
      _
    // Predicated region
    $region18: #{tpu_custom_call.1} parent=1 // pred_check
      _
    $region19: #{tpu_custom_call.1} parent=1 // pred_check_branch
      %34 = sbr.rel (0) target = $region21
    $region20: #{tpu_custom_call.1} parent=1 // pred_region
      _
    $region21: #{tpu_custom_call.1} parent=1 // pred_fallthru
      _
    // Predicated region
    $region22: #{tpu_custom_call.1} parent=1 // pred_check
      _
    $region23: #{tpu_custom_call.1} parent=1 // pred_check_branch
      %36 = sbr.rel (0) target = $region25
    $region24: #{tpu_custom_call.1} parent=1 // pred_region
      _
    $region25: #{tpu_custom_call.1} parent=1 // pred_fallthru
      _
    // Predicated region
    $region26: #{tpu_custom_call.1} parent=1 // pred_check
      _
    $region27: #{tpu_custom_call.1} parent=1 // pred_check_branch
      %38 = sbr.rel (0) target = $region29
    $region28: #{tpu_custom_call.1} parent=1 // pred_region
      %40 = vsyncadd [#allocation3], 0
      %s41 = sshll.u32 %s6, 4
      %s42 = int_to_ptr.hbm [resolvable:$true] %s41
      %s43 = sshll.u32 [#allocation2], 4
      %s44 = int_to_ptr.vmem [resolvable:$true] %s43
      %49 = dma.hbm_to_vmem [thread:$0]  %s42, 1024, %s44, [#allocation3], 64, 64, 4
    $region29: #{tpu_custom_call.1} parent=1 // pred_fallthru
      _
    // Predicated region
    $region30: #{tpu_custom_call.1} parent=1 // pred_check
      _
    $region31: #{tpu_custom_call.1} parent=1 // pred_check_branch
      %51 = sbr.rel (0) target = $region33
    $region32: #{tpu_custom_call.1} parent=1 // pred_region
      %53 = vsyncadd [#allocation6], 0
      %s54 = sshll.u32 %s7, 4
      %s55 = int_to_ptr.hbm [resolvable:$true] %s54
      %s56 = sshll.u32 [#allocation5], 4
      %s57 = int_to_ptr.vmem [resolvable:$true] %s56
      %62 = dma.hbm_to_vmem [thread:$0]  %s55, 1024, %s57, [#allocation6], 64, 64, 4
    $region33: #{tpu_custom_call.1} parent=1 // pred_fallthru
      _
    // Predicated region
    $region34: #{tpu_custom_call.1} parent=1 // pred_check
      _
    $region35: #{tpu_custom_call.1} parent=1 // pred_check_branch
      %64 = sbr.rel (0) target = $region37
    $region36: #{tpu_custom_call.1} parent=1 // pred_region
      _
    $region37: #{tpu_custom_call.1} parent=1 // pred_fallthru
      _
    // Predicated region
    $region38: #{tpu_custom_call.1} parent=1 // pred_check
      _
    $region39: #{tpu_custom_call.1} parent=1 // pred_check_branch
      %66 = sbr.rel (0) target = $region41
    $region40: #{tpu_custom_call.1} parent=1 // pred_region
      %68 = vsyncadd [#allocation6], 0
      %s69 = sshll.u32 %s9, 4
      %s70 = int_to_ptr.hbm [resolvable:$true] %s69
      %s71 = sshll.u32 [#allocation7], 4
      %s72 = int_to_ptr.vmem [resolvable:$true] %s71
      %77 = dma.hbm_to_vmem [thread:$0]  %s70, 1024, %s72, [#allocation6], 64, 64, 4
    $region41: #{tpu_custom_call.1} parent=1 // pred_fallthru
      _
    // Predicated region
    $region42: #{tpu_custom_call.1} parent=1 // pred_check
      _
    $region43: #{tpu_custom_call.1} parent=1 // pred_check_branch
      %79 = sbr.rel (0) target = $region45
    $region44: #{tpu_custom_call.1} parent=1 // pred_region
      %81 = vsyncadd [#allocation9], 0
      %s82 = sshll.u32 %s10, 4
      %s83 = int_to_ptr.hbm [resolvable:$true] %s82
      %s84 = sshll.u32 [#allocation8], 4
      %s85 = int_to_ptr.vmem [resolvable:$true] %s84
      %90 = dma.hbm_to_vmem [thread:$0]  %s83, 1024, %s85, [#allocation9], 64, 64, 4
    $region45: #{tpu_custom_call.1} parent=1 // pred_fallthru
      _
    // Predicated region
    $region46: #{tpu_custom_call.1} parent=1 // pred_check
      _
    $region47: #{tpu_custom_call.1} parent=1 // pred_check_branch
      %92 = sbr.rel (0) target = $region49
    $region48: #{tpu_custom_call.1} parent=1 // pred_region
      _
    $region49: #{tpu_custom_call.1} parent=1 // pred_fallthru
      _
    // Predicated region
    $region50: #{tpu_custom_call.1} parent=1 // pred_check
      _
    $region51: #{tpu_custom_call.1} parent=1 // pred_check_branch
      %94 = sbr.rel (0) target = $region53
    $region52: #{tpu_custom_call.1} parent=1 // pred_region
      %96 = vsyncadd [#allocation9], 0
      %s97 = sshll.u32 %s12, 4
      %s98 = int_to_ptr.hbm [resolvable:$true] %s97
      %s99 = sshll.u32 [#allocation10], 4
      %s100 = int_to_ptr.vmem [resolvable:$true] %s99
      %105 = dma.hbm_to_vmem [thread:$0]  %s98, 1024, %s100, [#allocation9], 64, 64, 4
    $region53: #{tpu_custom_call.1} parent=1 // pred_fallthru
      _
    // Predicated region
    $region54: #{tpu_custom_call.1} parent=1 // pred_check
      _
    $region55: #{tpu_custom_call.1} parent=1 // pred_check_branch
      %107 = sbr.rel (0) target = $region57
    $region56: #{tpu_custom_call.1} parent=1 // pred_region
      %109 = vsyncadd [#allocation12], 0
      %s110 = sshll.u32 %s13, 4
      %s111 = int_to_ptr.hbm [resolvable:$true] %s110
      %s112 = sshll.u32 [#allocation11], 4
      %s113 = int_to_ptr.vmem [resolvable:$true] %s112
      %118 = dma.hbm_to_vmem [thread:$0]  %s111, 1024, %s113, [#allocation12], 64, 64, 4
    $region57: #{tpu_custom_call.1} parent=1 // pred_fallthru
      _
    // Predicated region
    $region58: #{tpu_custom_call.1} parent=1 // pred_check
      _
    $region59: #{tpu_custom_call.1} parent=1 // pred_check_branch
      %120 = sbr.rel (0) target = $region61
    $region60: #{tpu_custom_call.1} parent=1 // pred_region
      _
    $region61: #{tpu_custom_call.1} parent=1 // pred_fallthru
      _
    // Predicated region
    $region62: #{tpu_custom_call.1} parent=1 // pred_check
      _
    $region63: #{tpu_custom_call.1} parent=1 // pred_check_branch
      %122 = sbr.rel (0) target = $region65
    $region64: #{tpu_custom_call.1} parent=1 // pred_region
      %124 = dma.done [#allocation3], 1024
    $region65: #{tpu_custom_call.1} parent=1 // pred_fallthru
      _
    // Predicated region
    $region66: #{tpu_custom_call.1} parent=1 // pred_check
      _
    $region67: #{tpu_custom_call.1} parent=1 // pred_check_branch
      %126 = sbr.rel (0) target = $region69
    $region68: #{tpu_custom_call.1} parent=1 // pred_region
      %128 = dma.done [#allocation6], 1024
    $region69: #{tpu_custom_call.1} parent=1 // pred_fallthru
      _
    // Predicated region
    $region70: #{tpu_custom_call.1} parent=1 // pred_check
      _
    $region71: #{tpu_custom_call.1} parent=1 // pred_check_branch
      %130 = sbr.rel (0) target = $region73
    $region72: #{tpu_custom_call.1} parent=1 // pred_region
      %132 = dma.done [#allocation6], 1024
    $region73: #{tpu_custom_call.1} parent=1 // pred_fallthru
      _
    // Predicated region
    $region74: #{tpu_custom_call.1} parent=1 // pred_check
      _
    $region75: #{tpu_custom_call.1} parent=1 // pred_check_branch
      %134 = sbr.rel (0) target = $region77
    $region76: #{tpu_custom_call.1} parent=1 // pred_region
      %136 = dma.done [#allocation9], 1024
    $region77: #{tpu_custom_call.1} parent=1 // pred_fallthru
      _
    // Predicated region
    $region78: #{tpu_custom_call.1} parent=1 // pred_check
      _
    $region79: #{tpu_custom_call.1} parent=1 // pred_check_branch
      %138 = sbr.rel (0) target = $region81
    $region80: #{tpu_custom_call.1} parent=1 // pred_region
      %140 = dma.done [#allocation9], 1024
    $region81: #{tpu_custom_call.1} parent=1 // pred_fallthru
      _
    // Predicated region
    $region82: #{tpu_custom_call.1} parent=1 // pred_check
      _
    $region83: #{tpu_custom_call.1} parent=1 // pred_check_branch
      %142 = sbr.rel (0) target = $region85
    $region84: #{tpu_custom_call.1} parent=1 // pred_region
      %144 = dma.done [#allocation12], 1024
    $region85: #{tpu_custom_call.1} parent=1 // pred_fallthru
      _
    %v146 = vld [vmem:[%s1] sm:$0xf]
    %v147 = vld [vmem:[%s1 + $0x4] sm:$0xf]
    %v148 = vld [vmem:[%s2] sm:$0xf]
    %v149 = vld [vmem:[%s2 + $0x4] sm:$0xf]
    %v150 = vld [vmem:[%s0] sm:$0xff]
    %v151 = vld [vmem:[%s0 + $0x8] sm:$0xff]
    %v152 = vld [vmem:[%s0 + $0x10] sm:$0xff]
    %v153 = vld [vmem:[%s0 + $0x18] sm:$0xff]
    %v154 = vpack.c.bf16 %v151, %v150
    %v155 = vpack.c.bf16 %v153, %v152
    %v158 = vunpack.c.l.b16 %v146
    %v159 = vunpack.c.l.b16 %v147
    %v160 = vpack.c.b16 %v159, %v158
    %vm161 = vcmask 261120
    %v163 = vsel %vm161, %v160, 0
    %165 = vmatpush.bf16.msra.mxu0 0
    %166 = vmatpush.bf16.msra.mxu0 0
    %167 = vmatpush.bf16.msra.mxu0 0
    %168 = vmatpush.bf16.msra.mxu0 0
    %169 = vmatpush.bf16.msra.mxu0 0
    %170 = vmatpush.bf16.msra.mxu0 0
    %171 = vmatpush.bf16.msra.mxu0 %v155
    %172 = vmatpush.bf16.msra.mxu0 %v154
    %173 = vmatmul.bf16.gmra.mxu0 %v163
    %v174 = vpop.f32.mrf.mxu0
    %v175 = vadd.f32 0.0, %v174
    %v176 = vpop.f32.mrf.mxu0
    %v177 = vadd.f32 0.0, %v176
    %178 = vdwg.mxu0
    %v179 = vpack.c.bf16 %v177, %v175
    %v182 = vunpack.c.l.b16 %v148
    %v183 = vunpack.c.l.b16 %v149
    %v184 = vpack.c.b16 %v183, %v182
    %vm185 = vcmask 130048
    %v187 = vsel %vm185, %v184, 0
    %189 = vmatpush.bf16.msra.mxu0 0
    %190 = vmatpush.bf16.msra.mxu0 0
    %191 = vmatpush.bf16.msra.mxu0 0
    %192 = vmatpush.bf16.msra.mxu0 0
    %193 = vmatpush.bf16.msra.mxu0 0
    %194 = vmatpush.bf16.msra.mxu0 0
    %195 = vmatpush.bf16.msra.mxu0 0
    %196 = vmatpush.bf16.msra.mxu0 %v179
    %197 = vmatmul.bf16.gmra.mxu0 %v187
    %v198 = vpop.f32.mrf.mxu0
    %v199 = vadd.f32 0.0, %v198
    %v200 = vpop.f32.mrf.mxu0
    %v201 = vadd.f32 0.0, %v200
    %202 = vdwg.mxu0
    %v203 = vpack.c.bf16 %v201, %v199
    %v204 = vld [vmem:[%s3] sm:$0xf]
    %v205 = vld [vmem:[%s3 + $0x4] sm:$0xf]
    %v206 = vld [vmem:[%s4] sm:$0xf]
    %v207 = vld [vmem:[%s4 + $0x4] sm:$0xf]
    %v210 = vunpack.c.l.b16 %v206
    %v211 = vunpack.c.l.b16 %v207
    %v212 = vpack.c.b16 %v211, %v210
    %v215 = vsel %vm185, %v203, 0
    %217 = vmatpush.bf16.msra.mxu0 0
    %218 = vmatpush.bf16.msra.mxu0 0
    %219 = vmatpush.bf16.msra.mxu0 0
    %220 = vmatpush.bf16.msra.mxu0 0
    %221 = vmatpush.bf16.msra.mxu0 0
    %222 = vmatpush.bf16.msra.mxu0 0
    %223 = vmatpush.bf16.msra.mxu0 0
    %224 = vmatpush.bf16.msra.mxu0 %v212
    %225 = vmatmul.bf16.gmra.mxu0 %v215
    %v226 = vpop.f32.mrf.mxu0
    %v227 = vadd.f32 0.0, %v226
    %v228 = vpop.f32.mrf.mxu0
    %v229 = vadd.f32 0.0, %v228
    %230 = vdwg.mxu0
    %v233 = vunpack.c.l.b16 %v204
    %v234 = vunpack.c.l.b16 %v205
    %v235 = vpack.c.b16 %v234, %v233
    %v238 = vsel %vm185, %v179, 0
    %240 = vmatpush.bf16.msra.mxu0 0
    %241 = vmatpush.bf16.msra.mxu0 0
    %242 = vmatpush.bf16.msra.mxu0 0
    %243 = vmatpush.bf16.msra.mxu0 0
    %244 = vmatpush.bf16.msra.mxu0 0
    %245 = vmatpush.bf16.msra.mxu0 0
    %246 = vmatpush.bf16.msra.mxu0 0
    %247 = vmatpush.bf16.msra.mxu0 %v235
    %248 = vmatmul.bf16.gmra.mxu0 %v238
    %v249 = vpop.f32.mrf.mxu0
    %v250 = vadd.f32 %v227, %v249
    %v251 = vpop.f32.mrf.mxu0
    %v252 = vadd.f32 %v229, %v251
    %253 = vdwg.mxu0
    %v254 = vld [vmem:[%s5] sm:$0x1]
    %v256 = vperm.slane %v254, 0
    %v258 = vadd.f32 %v250, %v256
    %v259 = vadd.f32 %v252, %v256
    %v260 = vmax.f32 %v258, 0.0
    %v261 = vmax.f32 %v259, 0.0
    %v262 = vpack.c.bf16 %v261, %v260
    %263 = vmatpush.bf16.msra.mxu0 0
    %264 = vmatpush.bf16.msra.mxu0 0
    %265 = vmatpush.bf16.msra.mxu0 0
    %266 = vmatpush.bf16.msra.mxu0 0
    %267 = vmatpush.bf16.msra.mxu0 0
    %268 = vmatpush.bf16.msra.mxu0 0
    %269 = vmatpush.bf16.msra.mxu0 0
    %270 = vmatpush.bf16.msra.mxu0 %v262
    %271 = vmatmul.bf16.gmra.mxu0 %v187
    %v272 = vpop.f32.mrf.mxu0
    %v273 = vadd.f32 0.0, %v272
    %v274 = vpop.f32.mrf.mxu0
    %v275 = vadd.f32 0.0, %v274
    %276 = vdwg.mxu0
    %v277 = vpack.c.bf16 %v275, %v273
    %v278 = vld [vmem:[#allocation2] sm:$0xf]
    %v279 = vld [vmem:[#allocation2 + $0x4] sm:$0xf]
    %v280 = vld [vmem:[#allocation2 + $0x8] sm:$0xf]
    %v281 = vld [vmem:[#allocation2 + $0xc] sm:$0xf]
    %v282 = vld [vmem:[#allocation2 + $0x10] sm:$0xf]
    %v283 = vld [vmem:[#allocation2 + $0x14] sm:$0xf]
    %v284 = vld [vmem:[#allocation2 + $0x18] sm:$0xf]
    %v285 = vld [vmem:[#allocation2 + $0x1c] sm:$0xf]
    %v286 = vld [vmem:[#allocation2 + $0x20] sm:$0xf]
    %v287 = vld [vmem:[#allocation2 + $0x24] sm:$0xf]
    %v288 = vld [vmem:[#allocation2 + $0x28] sm:$0xf]
    %v289 = vld [vmem:[#allocation2 + $0x2c] sm:$0xf]
    %v290 = vld [vmem:[#allocation2 + $0x30] sm:$0xf]
    %v291 = vld [vmem:[#allocation2 + $0x34] sm:$0xf]
    %v292 = vld [vmem:[#allocation2 + $0x38] sm:$0xf]
    %v293 = vld [vmem:[#allocation2 + $0x3c] sm:$0xf]
    %v294 = vld [vmem:[#allocation5] sm:$0xf]
    %v295 = vld [vmem:[#allocation5 + $0x4] sm:$0xf]
    %v296 = vld [vmem:[#allocation5 + $0x8] sm:$0xf]
    %v297 = vld [vmem:[#allocation5 + $0xc] sm:$0xf]
    %v298 = vld [vmem:[#allocation5 + $0x10] sm:$0xf]
    %v299 = vld [vmem:[#allocation5 + $0x14] sm:$0xf]
    %v300 = vld [vmem:[#allocation5 + $0x18] sm:$0xf]
    %v301 = vld [vmem:[#allocation5 + $0x1c] sm:$0xf]
    %v302 = vld [vmem:[#allocation5 + $0x20] sm:$0xf]
    %v303 = vld [vmem:[#allocation5 + $0x24] sm:$0xf]
    %v304 = vld [vmem:[#allocation5 + $0x28] sm:$0xf]
    %v305 = vld [vmem:[#allocation5 + $0x2c] sm:$0xf]
    %v306 = vld [vmem:[#allocation5 + $0x30] sm:$0xf]
    %v307 = vld [vmem:[#allocation5 + $0x34] sm:$0xf]
    %v308 = vld [vmem:[#allocation5 + $0x38] sm:$0xf]
    %v309 = vld [vmem:[#allocation5 + $0x3c] sm:$0xf]
    %v326 = vunpack.c.l.b16 %v294
    %v327 = vunpack.c.l.b16 %v295
    %v328 = vunpack.c.l.b16 %v296
    %v329 = vunpack.c.l.b16 %v297
    %v330 = vunpack.c.l.b16 %v298
    %v331 = vunpack.c.l.b16 %v299
    %v332 = vunpack.c.l.b16 %v300
    %v333 = vunpack.c.l.b16 %v301
    %v334 = vunpack.c.l.b16 %v302
    %v335 = vunpack.c.l.b16 %v303
    %v336 = vunpack.c.l.b16 %v304
    %v337 = vunpack.c.l.b16 %v305
    %v338 = vunpack.c.l.b16 %v306
    %v339 = vunpack.c.l.b16 %v307
    %v340 = vunpack.c.l.b16 %v308
    %v341 = vunpack.c.l.b16 %v309
    %v342 = vpack.c.b16 %v327, %v326
    %v343 = vpack.c.b16 %v329, %v328
    %v344 = vpack.c.b16 %v331, %v330
    %v345 = vpack.c.b16 %v333, %v332
    %v346 = vpack.c.b16 %v335, %v334
    %v347 = vpack.c.b16 %v337, %v336
    %v348 = vpack.c.b16 %v339, %v338
    %v349 = vpack.c.b16 %v341, %v340
    %358 = vmatpush.bf16.msra.mxu0 %v349
    %359 = vmatpush.bf16.msra.mxu0 %v348
    %360 = vmatpush.bf16.msra.mxu0 %v347
    %361 = vmatpush.bf16.msra.mxu0 %v346
    %362 = vmatpush.bf16.msra.mxu0 %v345
    %363 = vmatpush.bf16.msra.mxu0 %v344
    %364 = vmatpush.bf16.msra.mxu0 %v343
    %365 = vmatpush.bf16.msra.mxu0 %v342
    %366 = vmatmul.bf16.gmra.mxu0 %v277
    %v367 = vpop.f32.mrf.mxu0
    %v368 = vadd.f32 0.0, %v367
    %v369 = vpop.f32.mrf.mxu0
    %v370 = vadd.f32 0.0, %v369
    %371 = vdwg.mxu0
    %v388 = vunpack.c.l.b16 %v278
    %v389 = vunpack.c.l.b16 %v279
    %v390 = vunpack.c.l.b16 %v280
    %v391 = vunpack.c.l.b16 %v281
    %v392 = vunpack.c.l.b16 %v282
    %v393 = vunpack.c.l.b16 %v283
    %v394 = vunpack.c.l.b16 %v284
    %v395 = vunpack.c.l.b16 %v285
    %v396 = vunpack.c.l.b16 %v286
    %v397 = vunpack.c.l.b16 %v287
    %v398 = vunpack.c.l.b16 %v288
    %v399 = vunpack.c.l.b16 %v289
    %v400 = vunpack.c.l.b16 %v290
    %v401 = vunpack.c.l.b16 %v291
    %v402 = vunpack.c.l.b16 %v292
    %v403 = vunpack.c.l.b16 %v293
    %v404 = vpack.c.b16 %v389, %v388
    %v405 = vpack.c.b16 %v391, %v390
    %v406 = vpack.c.b16 %v393, %v392
    %v407 = vpack.c.b16 %v395, %v394
    %v408 = vpack.c.b16 %v397, %v396
    %v409 = vpack.c.b16 %v399, %v398
    %v410 = vpack.c.b16 %v401, %v400
    %v411 = vpack.c.b16 %v403, %v402
    %420 = vmatpush.bf16.msra.mxu0 %v411
    %421 = vmatpush.bf16.msra.mxu0 %v410
    %422 = vmatpush.bf16.msra.mxu0 %v409
    %423 = vmatpush.bf16.msra.mxu0 %v408
    %424 = vmatpush.bf16.msra.mxu0 %v407
    %425 = vmatpush.bf16.msra.mxu0 %v406
    %426 = vmatpush.bf16.msra.mxu0 %v405
    %427 = vmatpush.bf16.msra.mxu0 %v404
    %428 = vmatmul.bf16.gmra.mxu0 %v262
    %v429 = vpop.f32.mrf.mxu0
    %v430 = vadd.f32 %v368, %v429
    %v431 = vpop.f32.mrf.mxu0
    %v432 = vadd.f32 %v370, %v431
    %433 = vdwg.mxu0
    %v434 = vld [vmem:[%s8] sm:$0x1]
    %v436 = vperm.slane %v434, 0
    %v438 = vadd.f32 %v430, %v436
    %v439 = vadd.f32 %v432, %v436
    %v440 = vmax.f32 %v438, 0.0
    %v441 = vmax.f32 %v439, 0.0
    %v442 = vadd.f32 %v440, %v441
    %v443 = vrot.slane %v442, 4
    %v444 = vadd.f32 %v442, %v443
    %v445 = vrot.slane %v444, 2
    %v446 = vadd.f32 %v444, %v445
    %v447 = vrot.slane %v446, 1
    %v448 = vadd.f32 %v446, %v447
    %v449 = vrcp.pop 16.0
    %v450 = vmul.f32 16.0, %v449
    %v451 = vsub.f32 1.0, %v450
    %v452 = vmul.f32 %v449, %v451
    %v453 = vadd.f32 %v449, %v452
    %vm454 = vweird.f32 %v449
    %v455 = vsel %vm454, %v449, %v453
    %v456 = vmul.f32 %v448, %v455
    %v457 = vsub.f32 %v440, %v456
    %v458 = vsub.f32 %v441, %v456
    %v459 = vmul.f32 %v457, %v457
    %v460 = vmul.f32 %v458, %v458
    %v461 = vadd.f32 %v459, %v460
    %v462 = vrot.slane %v461, 4
    %v463 = vadd.f32 %v461, %v462
    %v464 = vrot.slane %v463, 2
    %v465 = vadd.f32 %v463, %v464
    %v466 = vrot.slane %v465, 1
    %v467 = vadd.f32 %v465, %v466
    %v468 = vmul.f32 %v467, %v455
    %v469 = vadd.f32 %v468, 1e-05
    %v470 = vrsqrt.pop %v469
    %v471 = vmul.f32 %v470, %v469
    %v472 = vmul.f32 %v471, %v470
    %v473 = vmul.f32 0.5, %v472
    %v474 = vsub.f32 1.5, %v473
    %v475 = vmul.f32 %v470, %v474
    %vm476 = vweird.f32 %v469
    %vm477 = vweird.f32 %v470
    %vm478 = vmor %vm476, %vm477
    %v479 = vsel %vm478, %v470, %v475
    %v480 = vmul.f32 %v457, %v479
    %v481 = vmul.f32 %v458, %v479
    %v482 = vpack.c.bf16 %v481, %v480
    %483 = vmatpush.bf16.msra.mxu0 0
    %484 = vmatpush.bf16.msra.mxu0 0
    %485 = vmatpush.bf16.msra.mxu0 0
    %486 = vmatpush.bf16.msra.mxu0 0
    %487 = vmatpush.bf16.msra.mxu0 0
    %488 = vmatpush.bf16.msra.mxu0 0
    %489 = vmatpush.bf16.msra.mxu0 0
    %490 = vmatpush.bf16.msra.mxu0 %v482
    %491 = vmatmul.bf16.gmra.mxu0 %v187
    %v492 = vpop.f32.mrf.mxu0
    %v493 = vadd.f32 0.0, %v492
    %v494 = vpop.f32.mrf.mxu0
    %v495 = vadd.f32 0.0, %v494
    %496 = vdwg.mxu0
    %v497 = vpack.c.bf16 %v495, %v493
    %v498 = vld [vmem:[#allocation7] sm:$0xf]
    %v499 = vld [vmem:[#allocation7 + $0x4] sm:$0xf]
    %v500 = vld [vmem:[#allocation7 + $0x8] sm:$0xf]
    %v501 = vld [vmem:[#allocation7 + $0xc] sm:$0xf]
    %v502 = vld [vmem:[#allocation7 + $0x10] sm:$0xf]
    %v503 = vld [vmem:[#allocation7 + $0x14] sm:$0xf]
    %v504 = vld [vmem:[#allocation7 + $0x18] sm:$0xf]
    %v505 = vld [vmem:[#allocation7 + $0x1c] sm:$0xf]
    %v506 = vld [vmem:[#allocation7 + $0x20] sm:$0xf]
    %v507 = vld [vmem:[#allocation7 + $0x24] sm:$0xf]
    %v508 = vld [vmem:[#allocation7 + $0x28] sm:$0xf]
    %v509 = vld [vmem:[#allocation7 + $0x2c] sm:$0xf]
    %v510 = vld [vmem:[#allocation7 + $0x30] sm:$0xf]
    %v511 = vld [vmem:[#allocation7 + $0x34] sm:$0xf]
    %v512 = vld [vmem:[#allocation7 + $0x38] sm:$0xf]
    %v513 = vld [vmem:[#allocation7 + $0x3c] sm:$0xf]
    %v514 = vld [vmem:[#allocation8] sm:$0xf]
    %v515 = vld [vmem:[#allocation8 + $0x4] sm:$0xf]
    %v516 = vld [vmem:[#allocation8 + $0x8] sm:$0xf]
    %v517 = vld [vmem:[#allocation8 + $0xc] sm:$0xf]
    %v518 = vld [vmem:[#allocation8 + $0x10] sm:$0xf]
    %v519 = vld [vmem:[#allocation8 + $0x14] sm:$0xf]
    %v520 = vld [vmem:[#allocation8 + $0x18] sm:$0xf]
    %v521 = vld [vmem:[#allocation8 + $0x1c] sm:$0xf]
    %v522 = vld [vmem:[#allocation8 + $0x20] sm:$0xf]
    %v523 = vld [vmem:[#allocation8 + $0x24] sm:$0xf]
    %v524 = vld [vmem:[#allocation8 + $0x28] sm:$0xf]
    %v525 = vld [vmem:[#allocation8 + $0x2c] sm:$0xf]
    %v526 = vld [vmem:[#allocation8 + $0x30] sm:$0xf]
    %v527 = vld [vmem:[#allocation8 + $0x34] sm:$0xf]
    %v528 = vld [vmem:[#allocation8 + $0x38] sm:$0xf]
    %v529 = vld [vmem:[#allocation8 + $0x3c] sm:$0xf]
    %v546 = vunpack.c.l.b16 %v514
    %v547 = vunpack.c.l.b16 %v515
    %v548 = vunpack.c.l.b16 %v516
    %v549 = vunpack.c.l.b16 %v517
    %v550 = vunpack.c.l.b16 %v518
    %v551 = vunpack.c.l.b16 %v519
    %v552 = vunpack.c.l.b16 %v520
    %v553 = vunpack.c.l.b16 %v521
    %v554 = vunpack.c.l.b16 %v522
    %v555 = vunpack.c.l.b16 %v523
    %v556 = vunpack.c.l.b16 %v524
    %v557 = vunpack.c.l.b16 %v525
    %v558 = vunpack.c.l.b16 %v526
    %v559 = vunpack.c.l.b16 %v527
    %v560 = vunpack.c.l.b16 %v528
    %v561 = vunpack.c.l.b16 %v529
    %v562 = vpack.c.b16 %v547, %v546
    %v563 = vpack.c.b16 %v549, %v548
    %v564 = vpack.c.b16 %v551, %v550
    %v565 = vpack.c.b16 %v553, %v552
    %v566 = vpack.c.b16 %v555, %v554
    %v567 = vpack.c.b16 %v557, %v556
    %v568 = vpack.c.b16 %v559, %v558
    %v569 = vpack.c.b16 %v561, %v560
    %578 = vmatpush.bf16.msra.mxu0 %v569
    %579 = vmatpush.bf16.msra.mxu0 %v568
    %580 = vmatpush.bf16.msra.mxu0 %v567
    %581 = vmatpush.bf16.msra.mxu0 %v566
    %582 = vmatpush.bf16.msra.mxu0 %v565
    %583 = vmatpush.bf16.msra.mxu0 %v564
    %584 = vmatpush.bf16.msra.mxu0 %v563
    %585 = vmatpush.bf16.msra.mxu0 %v562
    %586 = vmatmul.bf16.gmra.mxu0 %v497
    %v587 = vpop.f32.mrf.mxu0
    %v588 = vadd.f32 0.0, %v587
    %v589 = vpop.f32.mrf.mxu0
    %v590 = vadd.f32 0.0, %v589
    %591 = vdwg.mxu0
    %v608 = vunpack.c.l.b16 %v498
    %v609 = vunpack.c.l.b16 %v499
    %v610 = vunpack.c.l.b16 %v500
    %v611 = vunpack.c.l.b16 %v501
    %v612 = vunpack.c.l.b16 %v502
    %v613 = vunpack.c.l.b16 %v503
    %v614 = vunpack.c.l.b16 %v504
    %v615 = vunpack.c.l.b16 %v505
    %v616 = vunpack.c.l.b16 %v506
    %v617 = vunpack.c.l.b16 %v507
    %v618 = vunpack.c.l.b16 %v508
    %v619 = vunpack.c.l.b16 %v509
    %v620 = vunpack.c.l.b16 %v510
    %v621 = vunpack.c.l.b16 %v511
    %v622 = vunpack.c.l.b16 %v512
    %v623 = vunpack.c.l.b16 %v513
    %v624 = vpack.c.b16 %v609, %v608
    %v625 = vpack.c.b16 %v611, %v610
    %v626 = vpack.c.b16 %v613, %v612
    %v627 = vpack.c.b16 %v615, %v614
    %v628 = vpack.c.b16 %v617, %v616
    %v629 = vpack.c.b16 %v619, %v618
    %v630 = vpack.c.b16 %v621, %v620
    %v631 = vpack.c.b16 %v623, %v622
    %640 = vmatpush.bf16.msra.mxu0 %v631
    %641 = vmatpush.bf16.msra.mxu0 %v630
    %642 = vmatpush.bf16.msra.mxu0 %v629
    %643 = vmatpush.bf16.msra.mxu0 %v628
    %644 = vmatpush.bf16.msra.mxu0 %v627
    %645 = vmatpush.bf16.msra.mxu0 %v626
    %646 = vmatpush.bf16.msra.mxu0 %v625
    %647 = vmatpush.bf16.msra.mxu0 %v624
    %648 = vmatmul.bf16.gmra.mxu0 %v482
    %v649 = vpop.f32.mrf.mxu0
    %v650 = vadd.f32 %v588, %v649
    %v651 = vpop.f32.mrf.mxu0
    %v652 = vadd.f32 %v590, %v651
    %653 = vdwg.mxu0
    %v654 = vld [vmem:[%s11] sm:$0x1]
    %v656 = vperm.slane %v654, 0
    %v658 = vadd.f32 %v650, %v656
    %v659 = vadd.f32 %v652, %v656
    %v660 = vmax.f32 %v658, 0.0
    %v661 = vmax.f32 %v659, 0.0
    %v662 = vpack.c.bf16 %v661, %v660
    %663 = vmatpush.bf16.msra.mxu0 0
    %664 = vmatpush.bf16.msra.mxu0 0
    %665 = vmatpush.bf16.msra.mxu0 0
    %666 = vmatpush.bf16.msra.mxu0 0
    %667 = vmatpush.bf16.msra.mxu0 0
    %668 = vmatpush.bf16.msra.mxu0 0
    %669 = vmatpush.bf16.msra.mxu0 0
    %670 = vmatpush.bf16.msra.mxu0 %v662
    %671 = vmatmul.bf16.gmra.mxu0 %v187
    %v672 = vpop.f32.mrf.mxu0
    %v673 = vadd.f32 0.0, %v672
    %v674 = vpop.f32.mrf.mxu0
    %v675 = vadd.f32 0.0, %v674
    %676 = vdwg.mxu0
    %v677 = vpack.c.bf16 %v675, %v673
    %v678 = vld [vmem:[#allocation10] sm:$0xf]
    %v679 = vld [vmem:[#allocation10 + $0x4] sm:$0xf]
    %v680 = vld [vmem:[#allocation10 + $0x8] sm:$0xf]
    %v681 = vld [vmem:[#allocation10 + $0xc] sm:$0xf]
    %v682 = vld [vmem:[#allocation10 + $0x10] sm:$0xf]
    %v683 = vld [vmem:[#allocation10 + $0x14] sm:$0xf]
    %v684 = vld [vmem:[#allocation10 + $0x18] sm:$0xf]
    %v685 = vld [vmem:[#allocation10 + $0x1c] sm:$0xf]
    %v686 = vld [vmem:[#allocation10 + $0x20] sm:$0xf]
    %v687 = vld [vmem:[#allocation10 + $0x24] sm:$0xf]
    %v688 = vld [vmem:[#allocation10 + $0x28] sm:$0xf]
    %v689 = vld [vmem:[#allocation10 + $0x2c] sm:$0xf]
    %v690 = vld [vmem:[#allocation10 + $0x30] sm:$0xf]
    %v691 = vld [vmem:[#allocation10 + $0x34] sm:$0xf]
    %v692 = vld [vmem:[#allocation10 + $0x38] sm:$0xf]
    %v693 = vld [vmem:[#allocation10 + $0x3c] sm:$0xf]
    %v694 = vld [vmem:[#allocation11] sm:$0xf]
    %v695 = vld [vmem:[#allocation11 + $0x4] sm:$0xf]
    %v696 = vld [vmem:[#allocation11 + $0x8] sm:$0xf]
    %v697 = vld [vmem:[#allocation11 + $0xc] sm:$0xf]
    %v698 = vld [vmem:[#allocation11 + $0x10] sm:$0xf]
    %v699 = vld [vmem:[#allocation11 + $0x14] sm:$0xf]
    %v700 = vld [vmem:[#allocation11 + $0x18] sm:$0xf]
    %v701 = vld [vmem:[#allocation11 + $0x1c] sm:$0xf]
    %v702 = vld [vmem:[#allocation11 + $0x20] sm:$0xf]
    %v703 = vld [vmem:[#allocation11 + $0x24] sm:$0xf]
    %v704 = vld [vmem:[#allocation11 + $0x28] sm:$0xf]
    %v705 = vld [vmem:[#allocation11 + $0x2c] sm:$0xf]
    %v706 = vld [vmem:[#allocation11 + $0x30] sm:$0xf]
    %v707 = vld [vmem:[#allocation11 + $0x34] sm:$0xf]
    %v708 = vld [vmem:[#allocation11 + $0x38] sm:$0xf]
    %v709 = vld [vmem:[#allocation11 + $0x3c] sm:$0xf]
    %v726 = vunpack.c.l.b16 %v694
    %v727 = vunpack.c.l.b16 %v695
    %v728 = vunpack.c.l.b16 %v696
    %v729 = vunpack.c.l.b16 %v697
    %v730 = vunpack.c.l.b16 %v698
    %v731 = vunpack.c.l.b16 %v699
    %v732 = vunpack.c.l.b16 %v700
    %v733 = vunpack.c.l.b16 %v701
    %v734 = vunpack.c.l.b16 %v702
    %v735 = vunpack.c.l.b16 %v703
    %v736 = vunpack.c.l.b16 %v704
    %v737 = vunpack.c.l.b16 %v705
    %v738 = vunpack.c.l.b16 %v706
    %v739 = vunpack.c.l.b16 %v707
    %v740 = vunpack.c.l.b16 %v708
    %v741 = vunpack.c.l.b16 %v709
    %v742 = vpack.c.b16 %v727, %v726
    %v743 = vpack.c.b16 %v729, %v728
    %v744 = vpack.c.b16 %v731, %v730
    %v745 = vpack.c.b16 %v733, %v732
    %v746 = vpack.c.b16 %v735, %v734
    %v747 = vpack.c.b16 %v737, %v736
    %v748 = vpack.c.b16 %v739, %v738
    %v749 = vpack.c.b16 %v741, %v740
    %758 = vmatpush.bf16.msra.mxu0 %v749
    %759 = vmatpush.bf16.msra.mxu0 %v748
    %760 = vmatpush.bf16.msra.mxu0 %v747
    %761 = vmatpush.bf16.msra.mxu0 %v746
    %762 = vmatpush.bf16.msra.mxu0 %v745
    %763 = vmatpush.bf16.msra.mxu0 %v744
    %764 = vmatpush.bf16.msra.mxu0 %v743
    %765 = vmatpush.bf16.msra.mxu0 %v742
    %766 = vmatmul.bf16.gmra.mxu0 %v677
    %v767 = vpop.f32.mrf.mxu0
    %v768 = vadd.f32 0.0, %v767
    %v769 = vpop.f32.mrf.mxu0
    %v770 = vadd.f32 0.0, %v769
    %771 = vdwg.mxu0
    %v788 = vunpack.c.l.b16 %v678
    %v789 = vunpack.c.l.b16 %v679
    %v790 = vunpack.c.l.b16 %v680
    %v791 = vunpack.c.l.b16 %v681
    %v792 = vunpack.c.l.b16 %v682
    %v793 = vunpack.c.l.b16 %v683
    %v794 = vunpack.c.l.b16 %v684
    %v795 = vunpack.c.l.b16 %v685
    %v796 = vunpack.c.l.b16 %v686
    %v797 = vunpack.c.l.b16 %v687
    %v798 = vunpack.c.l.b16 %v688
    %v799 = vunpack.c.l.b16 %v689
    %v800 = vunpack.c.l.b16 %v690
    %v801 = vunpack.c.l.b16 %v691
    %v802 = vunpack.c.l.b16 %v692
    %v803 = vunpack.c.l.b16 %v693
    %v804 = vpack.c.b16 %v789, %v788
    %v805 = vpack.c.b16 %v791, %v790
    %v806 = vpack.c.b16 %v793, %v792
    %v807 = vpack.c.b16 %v795, %v794
    %v808 = vpack.c.b16 %v797, %v796
    %v809 = vpack.c.b16 %v799, %v798
    %v810 = vpack.c.b16 %v801, %v800
    %v811 = vpack.c.b16 %v803, %v802
    %820 = vmatpush.bf16.msra.mxu0 %v811
    %821 = vmatpush.bf16.msra.mxu0 %v810
    %822 = vmatpush.bf16.msra.mxu0 %v809
    %823 = vmatpush.bf16.msra.mxu0 %v808
    %824 = vmatpush.bf16.msra.mxu0 %v807
    %825 = vmatpush.bf16.msra.mxu0 %v806
    %826 = vmatpush.bf16.msra.mxu0 %v805
    %827 = vmatpush.bf16.msra.mxu0 %v804
    %828 = vmatmul.bf16.gmra.mxu0 %v662
    %v829 = vpop.f32.mrf.mxu0
    %v830 = vadd.f32 %v768, %v829
    %v831 = vpop.f32.mrf.mxu0
    %v832 = vadd.f32 %v770, %v831
    %833 = vdwg.mxu0
    %v834 = vld [vmem:[%s14] sm:$0x1]
    %v836 = vperm.slane %v834, 0
    %v838 = vadd.f32 %v830, %v836
    %v839 = vadd.f32 %v832, %v836
    %v840 = vmax.f32 %v838, 0.0
    %v841 = vmax.f32 %v839, 0.0
    %v842 = vadd.f32 %v840, %v841
    %v843 = vrot.slane %v842, 4
    %v844 = vadd.f32 %v842, %v843
    %v845 = vrot.slane %v844, 2
    %v846 = vadd.f32 %v844, %v845
    %v847 = vrot.slane %v846, 1
    %v848 = vadd.f32 %v846, %v847
    %v849 = vmul.f32 %v848, %v455
    %v850 = vsub.f32 %v840, %v849
    %v851 = vsub.f32 %v841, %v849
    %v852 = vmul.f32 %v850, %v850
    %v853 = vmul.f32 %v851, %v851
    %v854 = vadd.f32 %v852, %v853
    %v855 = vrot.slane %v854, 4
    %v856 = vadd.f32 %v854, %v855
    %v857 = vrot.slane %v856, 2
    %v858 = vadd.f32 %v856, %v857
    %v859 = vrot.slane %v858, 1
    %v860 = vadd.f32 %v858, %v859
    %v861 = vmul.f32 %v860, %v455
    %v862 = vadd.f32 %v861, 1e-05
    %v863 = vrsqrt.pop %v862
    %v864 = vmul.f32 %v863, %v862
    %v865 = vmul.f32 %v864, %v863
    %v866 = vmul.f32 0.5, %v865
    %v867 = vsub.f32 1.5, %v866
    %v868 = vmul.f32 %v863, %v867
    %vm869 = vweird.f32 %v862
    %vm870 = vweird.f32 %v863
    %vm871 = vmor %vm869, %vm870
    %v872 = vsel %vm871, %v863, %v868
    %v873 = vmul.f32 %v850, %v872
    %v874 = vmul.f32 %v851, %v872
    %875 = vst [vmem:[#allocation13] sm:$0xff] %v873
    %876 = vst [vmem:[#allocation13 + $0x8] sm:$0xff] %v874
    // Predicated region
    $region86: #{tpu_custom_call.1} parent=1 // pred_check
      _
    $region87: #{tpu_custom_call.1} parent=1 // pred_check_branch
      %878 = sbr.rel (0) target = $region89
    $region88: #{tpu_custom_call.1} parent=1 // pred_region
      %880 = vsyncadd [#allocation4], 0
      %s881 = sshll.u32 [#allocation13], 4
      %s882 = int_to_ptr.vmem [resolvable:$true] %s881
      %s883 = sshll.u32 %s15, 4
      %s884 = int_to_ptr.hbm [resolvable:$true] %s883
      %889 = dma.vmem_to_hbm [thread:$0]  %s882, 256, %s884, [#allocation4], 128, 128, 8
    $region89: #{tpu_custom_call.1} parent=1 // pred_fallthru
      _
    // Predicated region
    $region90: #{tpu_custom_call.1} parent=1 // pred_check
      _
    $region91: #{tpu_custom_call.1} parent=1 // pred_check_branch
      %891 = sbr.rel (0) target = $region93
    $region92: #{tpu_custom_call.1} parent=1 // pred_region
      %893 = dma.done [#allocation4], 256
    $region93: #{tpu_custom_call.1} parent=1 // pred_fallthru
      _
    %894 = vsyncpa [#allocation3], 1
    %895 = vsyncpa [#allocation6], 1
    %896 = vsyncpa [#allocation9], 1
    %897 = vsyncpa [#allocation12], 1
    %898 = vsyncpa [#allocation4], 1

</llo_original>
